<compile_context>
chip_gen: v6e
topology: v6e:2x2x1
jax: 0.10.0
libtpu: 0.0.40
codegen_flags: <defaults>
</compile_context>

<pallas_src>
import functools

import jax
import jax.numpy as jnp
from jax import lax
from jax.experimental import pallas as pl
from jax.experimental.pallas import tpu as pltpu


# ----------------------------- chip-aware planning -----------------------------

@functools.lru_cache(maxsize=None)
def _chip_plan():
    """(max_row_tile, vmem_limit_bytes) per TPU generation.

    v5e/v6e (128 MiB VMEM): TM up to 1024, ~96 MiB scoped limit.
    v7x (64 MiB per TC) or unknown: TM capped at 512, ~48 MiB limit for headroom.
    """
    try:
        vmem_cap = int(pltpu.get_tpu_info().vmem_capacity_bytes)
    except Exception:
        vmem_cap = 64 * 1024 * 1024
    vmem_limit = min((vmem_cap * 3) // 4, 96 * 1024 * 1024)
    max_tm = 1024 if vmem_cap >= 96 * 1024 * 1024 else 512
    return max_tm, vmem_limit


def _cparams(*sem):
    _, vmem_limit = _chip_plan()
    if sem:
        return pltpu.CompilerParams(dimension_semantics=sem,
                                    vmem_limit_bytes=vmem_limit)
    return pltpu.CompilerParams(vmem_limit_bytes=vmem_limit)


def _row_plan(M):
    """Pick a row tile TM and padded row count Mp (multiple of TM, >= M)."""
    max_tm, _ = _chip_plan()
    for t in (1024, 512, 256, 128, 64, 32, 16, 8):
        if t <= max_tm and M % t == 0:
            return t, M
    tm = min(max_tm, max(8, pl.next_power_of_2(M)))
    return tm, pl.cdiv(M, tm) * tm


def _pad_rows(x, Mp):
    if Mp == x.shape[0]:
        return x
    return jnp.pad(x, ((0, Mp - x.shape[0]), (0, 0)))


_VMEM = functools.partial(pl.BlockSpec, memory_space=pltpu.MemorySpace.VMEM)


# ----------------------------- in-kernel helpers -----------------------------

def _layernorm(x, gamma, beta, eps=1e-12):
    mu = jnp.mean(x, axis=-1, keepdims=True)
    var = jnp.mean((x - mu) ** 2, axis=-1, keepdims=True)
    return (x - mu) * lax.rsqrt(var + eps) * gamma + beta


def _gelu(x):
    # tanh approximation ("gelu_new"); exact-erf form differs slightly from HF default.
    c = 0.7978845608028654  # sqrt(2/pi)
    return 0.5 * x * (1.0 + jnp.tanh(c * (x + 0.044715 * x * x * x)))


# ------------------------------- Pallas kernels -------------------------------

def dense_act_kernel(act, x_ref, w_ref, b_ref, o_ref):
    """(TM, K) x (K, N) + b, optional GELU; bf16 operands, f32 accumulation."""
    y = jnp.dot(x_ref[...], w_ref[...], preferred_element_type=jnp.float32)
    y = y + b_ref[...].astype(jnp.float32)
    if act == "gelu":
        y = _gelu(y)
    o_ref[...] = y.astype(o_ref.dtype)


def dense_residual_ln_kernel(x_ref, r_ref, w_ref, b_ref, g_ref, be_ref, o_ref):
    """LayerNorm(resid + x @ W + b): matmul with fused residual-add + LayerNorm."""
    y = jnp.dot(x_ref[...], w_ref[...], preferred_element_type=jnp.float32)
    y = y + b_ref[...].astype(jnp.float32) + r_ref[...].astype(jnp.float32)
    y = _layernorm(y, g_ref[...].astype(jnp.float32), be_ref[...].astype(jnp.float32))
    o_ref[...] = y.astype(o_ref.dtype)


def layernorm_cast_kernel(x_ref, g_ref, b_ref, o_ref):
    """Embedding LayerNorm + bf16 cast, single pass over a row tile."""
    y = _layernorm(x_ref[...].astype(jnp.float32),
                   g_ref[...].astype(jnp.float32),
                   b_ref[...].astype(jnp.float32))
    o_ref[...] = y.astype(o_ref.dtype)


def attn_core_kernel(nh, hd, sm_scale, qkv_ref, mask_ref, o_ref):
    """Per-batch attention: heads looped in-kernel, lane-dense (S, H) output slab.

    qkv_ref: (1, S, 3H) laid out [q(H) | k(H) | v(H)], heads as (nh, hd) inside each H.
    mask_ref: (1, 1, S) key-validity mask.  o_ref: (1, S, H).
    """
    S = qkv_ref.shape[1]
    H = nh * hd
    qkv = qkv_ref[...].reshape(S, 3 * H)
    mask = mask_ref[...].reshape(1, S).astype(jnp.float32)        # (1, S) over keys
    bias = (1.0 - mask) * -1e9

    # TODO(synk): for S >> 512, block the key axis with a running max/sum instead of
    # materializing the full (S, S) f32 score matrix.
    ctx_heads = []
    for h in range(nh):                                           # static, fully unrolled
        q = qkv[:, h * hd:(h + 1) * hd]
        k = qkv[:, H + h * hd:H + (h + 1) * hd]
        v = qkv[:, 2 * H + h * hd:2 * H + (h + 1) * hd]
        s = lax.dot_general(q, k, (((1,), (1,)), ((), ())),
                            preferred_element_type=jnp.float32) * sm_scale + bias
        s = s - jnp.max(s, axis=-1, keepdims=True)
        p = jnp.exp(s)
        p = p * pl.reciprocal(jnp.sum(p, axis=-1, keepdims=True), approx=True)
        ctx_heads.append(jnp.dot(p.astype(v.dtype), v,
                                 preferred_element_type=jnp.float32))
    ctx = jnp.concatenate(ctx_heads, axis=-1)                     # (S, H) lane-dense
    o_ref[...] = ctx.reshape(1, S, H).astype(o_ref.dtype)


def pooler_classifier_kernel(keep_scale, cls_ref, keep_ref,
                             wp_ref, bp_ref, wc_ref, bc_ref, o_ref):
    """BERT pooler tanh(CLS @ Wp + bp) -> inverted dropout -> classifier linear."""
    pooled = jnp.tanh(jnp.dot(cls_ref[...], wp_ref[...],
                              preferred_element_type=jnp.float32)
                      + bp_ref[...].astype(jnp.float32))
    pooled = pooled * keep_ref[...].astype(jnp.float32) * keep_scale
    logits = jnp.dot(pooled.astype(wc_ref.dtype), wc_ref[...],
                     preferred_element_type=jnp.float32) + bc_ref[...].astype(jnp.float32)
    o_ref[...] = logits.astype(o_ref.dtype)


# ------------------------------ pallas_call wrappers ------------------------------

def dense_act(x, w, b, act=None):
    M, K = x.shape
    N = w.shape[1]
    TM, Mp = _row_plan(M)
    xp = _pad_rows(x, Mp)
    y = pl.pallas_call(
        functools.partial(dense_act_kernel, act),
        grid=(Mp // TM,),
        in_specs=[pl.BlockSpec((TM, K), lambda i: (i, 0)),
                  pl.BlockSpec((K, N), lambda i: (0, 0)),      # weights resident
                  pl.BlockSpec((1, N), lambda i: (0, 0))],
        out_specs=pl.BlockSpec((TM, N), lambda i: (i, 0)),
        out_shape=jax.ShapeDtypeStruct((Mp, N), jnp.bfloat16),
        compiler_params=_cparams("parallel"),
    )(xp, w, b)
    return y[:M] if Mp != M else y


def dense_residual_ln(x, resid, w, b, gamma, beta):
    M, K = x.shape
    N = w.shape[1]
    TM, Mp = _row_plan(M)
    xp = _pad_rows(x, Mp)
    rp = _pad_rows(resid, Mp)
    y = pl.pallas_call(
        dense_residual_ln_kernel,
        grid=(Mp // TM,),
        in_specs=[pl.BlockSpec((TM, K), lambda i: (i, 0)),
                  pl.BlockSpec((TM, N), lambda i: (i, 0)),
                  pl.BlockSpec((K, N), lambda i: (0, 0)),      # weights resident
                  pl.BlockSpec((1, N), lambda i: (0, 0)),
                  pl.BlockSpec((1, N), lambda i: (0, 0)),
                  pl.BlockSpec((1, N), lambda i: (0, 0))],
        out_specs=pl.BlockSpec((TM, N), lambda i: (i, 0)),
        out_shape=jax.ShapeDtypeStruct((Mp, N), jnp.bfloat16),
        compiler_params=_cparams("parallel"),
    )(xp, rp, w, b, gamma, beta)
    return y[:M] if Mp != M else y


def layernorm_cast(x_f32, gamma, beta):
    M, H = x_f32.shape
    TM, Mp = _row_plan(M)
    xp = _pad_rows(x_f32, Mp)
    y = pl.pallas_call(
        layernorm_cast_kernel,
        grid=(Mp // TM,),
        in_specs=[pl.BlockSpec((TM, H), lambda i: (i, 0)),
                  pl.BlockSpec((1, H), lambda i: (0, 0)),
                  pl.BlockSpec((1, H), lambda i: (0, 0))],
        out_specs=pl.BlockSpec((TM, H), lambda i: (i, 0)),
        out_shape=jax.ShapeDtypeStruct((Mp, H), jnp.bfloat16),
        compiler_params=_cparams("parallel"),
    )(xp, gamma, beta)
    return y[:M] if Mp != M else y


def attention_core(qkv_flat, mask_b1s, B, S, nh, hd):
    """qkv_flat: (B*S, 3H) bf16 -> context (B*S, H) bf16.  No XLA transposes."""
    H = nh * hd
    qkv = qkv_flat.reshape(B, S, 3 * H)                            # contiguous: free
    sm_scale = 1.0 / (hd ** 0.5)
    out = pl.pallas_call(
        functools.partial(attn_core_kernel, nh, hd, sm_scale),
        grid=(B,),
        in_specs=[pl.BlockSpec((1, S, 3 * H), lambda b: (b, 0, 0)),
                  pl.BlockSpec((1, 1, S), lambda b: (b, 0, 0))],
        out_specs=pl.BlockSpec((1, S, H), lambda b: (b, 0, 0)),    # lane-dense slab
        out_shape=jax.ShapeDtypeStruct((B, S, H), jnp.bfloat16),
        compiler_params=_cparams("parallel"),
    )(qkv, mask_b1s)
    return out.reshape(B * S, H)                                   # contiguous: free


def pooler_classifier(cls_tok, keep_mask, wp, bp, wc, bc, keep_scale):
    B = cls_tok.shape[0]
    C = wc.shape[1]
    return pl.pallas_call(
        functools.partial(pooler_classifier_kernel, keep_scale),
        in_specs=[_VMEM()] * 6,
        out_specs=_VMEM(),
        out_shape=jax.ShapeDtypeStruct((B, C), jnp.float32),
        compiler_params=_cparams(),
    )(cls_tok, keep_mask, wp, bp, wc, bc)


# ------------------------------ encoder layer ------------------------------

def encoder_layer(x_flat, mask_b1s, lp, B, S, nh, hd):
    # fused QKV projection (wide N = 3H keeps the MXU filled); output is consumed
    # directly by the attention kernel (no head-split transposes).
    qkv = dense_act(x_flat, lp['wqkv'], lp['bqkv'])                # (M, 3H) bf16
    ctx = attention_core(qkv, mask_b1s, B, S, nh, hd)              # (M, H) bf16

    h1 = dense_residual_ln(ctx, x_flat, lp['wo'], lp['bo'], lp['ln1_g'], lp['ln1_b'])
    f = dense_act(h1, lp['w_ff1'], lp['b_ff1'], act="gelu")        # (M, FF)
    return dense_residual_ln(f, h1, lp['w_ff2'], lp['b_ff2'], lp['ln2_g'], lp['ln2_b'])


# ------------------------------ forward (module semantics) ------------------------------

def bert_classifier_forward(params, token_ids, valid_length, segment_ids,
                            dr_rate, dropout_key, nh, train=True):
    B, S = token_ids.shape
    H = params['tok_emb'].shape[1]
    hd = H // nh

    # gen_attention_mask(token_ids, valid_length): 1.0 where position < valid_length[i]
    attention_mask = (jnp.arange(S)[None, :] < valid_length[:, None]).astype(jnp.float32)
    mask_b1s = attention_mask[:, None, :]                          # (B, 1, S)

    # BERT embeddings: gathers stay in XLA; LayerNorm + bf16 cast run in Pallas.
    emb = (params['tok_emb'][token_ids]
           + params['pos_emb'][:S][None, :, :]
           + params['seg_emb'][segment_ids]).astype(jnp.float32)
    x = layernorm_cast(emb.reshape(B * S, H), params['emb_ln_g'], params['emb_ln_b'])

    for lp in params['layers']:
        x = encoder_layer(x, mask_b1s, lp, B, S, nh, hd)

    # outputs[1] (pooler) path: only the [CLS] row enters the pooler kernel
    cls_tok = x.reshape(B, S, H)[:, 0, :]                          # (B, H) bf16
    if dr_rate and train:
        keep_mask = jax.random.bernoulli(dropout_key, 1.0 - dr_rate, (B, H)).astype(jnp.float32)
        keep_scale = 1.0 / (1.0 - dr_rate)
    else:                                                          # eval: dropout = identity
        keep_mask = jnp.ones((B, H), jnp.float32)
        keep_scale = 1.0
    logits = pooler_classifier(cls_tok, keep_mask,
                               params['pooler_w'], params['pooler_b'],
                               params['cls_w'], params['cls_b'], keep_scale)
    return logits


# ------------------------------ deterministic parameter init ------------------------------

def init_params(key, vocab, type_vocab, max_pos, hidden, ff, n_layers, num_classes):
    wdt = jnp.bfloat16

    def dense_p(k, din, dout):
        w = (jax.random.normal(k, (din, dout), jnp.float32) * 0.02).astype(wdt)
        return w, jnp.zeros((1, dout), wdt)

    keys = iter(jax.random.split(key, 3 + 4 * n_layers + 2))
    params = {
        'tok_emb': jax.random.normal(next(keys), (vocab, hidden), jnp.float32) * 0.02,
        'pos_emb': jax.random.normal(next(keys), (max_pos, hidden), jnp.float32) * 0.02,
        'seg_emb': jax.random.normal(next(keys), (type_vocab, hidden), jnp.float32) * 0.02,
        'emb_ln_g': jnp.ones((1, hidden), jnp.float32),
        'emb_ln_b': jnp.zeros((1, hidden), jnp.float32),
        'layers': [],
    }
    for _ in range(n_layers):
        wqkv, bqkv = dense_p(next(keys), hidden, 3 * hidden)
        wo, bo = dense_p(next(keys), hidden, hidden)
        w1, b1 = dense_p(next(keys), hidden, ff)
        w2, b2 = dense_p(next(keys), ff, hidden)
        params['layers'].append({
            'wqkv': wqkv, 'bqkv': bqkv, 'wo': wo, 'bo': bo,
            'ln1_g': jnp.ones((1, hidden), jnp.float32),
            'ln1_b': jnp.zeros((1, hidden), jnp.float32),
            'w_ff1': w1, 'b_ff1': b1, 'w_ff2': w2, 'b_ff2': b2,
            'ln2_g': jnp.ones((1, hidden), jnp.float32),
            'ln2_b': jnp.zeros((1, hidden), jnp.float32),
        })
    params['pooler_w'], params['pooler_b'] = dense_p(next(keys), hidden, hidden)
    params['cls_w'], params['cls_b'] = dense_p(next(keys), hidden, num_classes)
    return params


if __name__ == "__main__":
    B, S, H, NH, FF, L = 2, 8, 32, 4, 64, 2
    VOCAB, TYPE_VOCAB, MAX_POS, NUM_CLASSES = 64, 2, 16, 2
    DR_RATE = 0.1

    root = jax.random.PRNGKey(0)
    pkey, tkey, dkey = jax.random.split(root, 3)
    params = init_params(pkey, VOCAB, TYPE_VOCAB, MAX_POS, H, FF, L, NUM_CLASSES)

    token_ids = jax.random.randint(tkey, (B, S), 0, VOCAB, dtype=jnp.int32)
    valid_length = jnp.array([8, 5], dtype=jnp.int32)
    segment_ids = jnp.zeros((B, S), dtype=jnp.int32)

    logits = bert_classifier_forward(params, token_ids, valid_length, segment_ids,
                                     DR_RATE, dkey, NH, train=True)
    jax.block_until_ready(logits)
    assert logits.shape == (B, NUM_CLASSES) and bool(jnp.all(jnp.isfinite(logits)))
    print("KERNEL_OK")
</pallas_src>

<mosaic_0001>
module attributes {stable_mosaic.version = 11 : i64} {
  func.func @layernorm_cast_kernel(%arg0: i32, %arg1: memref<16x32xf32, #tpu.memory_space<vmem>>, %arg2: memref<1x32xf32, #tpu.memory_space<vmem>>, %arg3: memref<1x32xf32, #tpu.memory_space<vmem>>, %arg4: memref<16x32xbf16, #tpu.memory_space<vmem>>) attributes {dimension_semantics = [#tpu.dimension_semantics<parallel>], iteration_bounds = array<i64: 1>, scalar_prefetch = 0 : i64, scratch_operands = 0 : i64, tpu.core_type = #tpu.core_type<tc>, window_params = [{transform_indices = @transform_0, window_bounds = array<i64: 16, 32>}, {pipeline_mode = #tpu.pipeline_mode<synchronous>, transform_indices = @transform_1, window_bounds = array<i64: 1, 32>}, {pipeline_mode = #tpu.pipeline_mode<synchronous>, transform_indices = @transform_2, window_bounds = array<i64: 1, 32>}, {transform_indices = @transform_3, window_bounds = array<i64: 16, 32>}]} {
    %c0 = arith.constant 0 : index
    %c0_0 = arith.constant 0 : index
    %0 = vector.load %arg1[%c0, %c0_0] : memref<16x32xf32, #tpu.memory_space<vmem>>, vector<16x32xf32>
    %c0_1 = arith.constant 0 : index
    %c0_2 = arith.constant 0 : index
    %1 = vector.load %arg2[%c0_1, %c0_2] : memref<1x32xf32, #tpu.memory_space<vmem>>, vector<1x32xf32>
    %c0_3 = arith.constant 0 : index
    %c0_4 = arith.constant 0 : index
    %2 = vector.load %arg3[%c0_3, %c0_4] : memref<1x32xf32, #tpu.memory_space<vmem>>, vector<1x32xf32>
    %cst = arith.constant dense<0.000000e+00> : vector<16xf32>
    %3 = vector.multi_reduction <add>, %0, %cst [1] : vector<16x32xf32> to vector<16xf32>
    %4 = vector.shape_cast %3 : vector<16xf32> to vector<16x1xf32>
    %cst_5 = arith.constant 3.200000e+01 : f32
    %5 = vector.broadcast %cst_5 : f32 to vector<16x1xf32>
    %6 = arith.divf %4, %5 : vector<16x1xf32>
    %7 = vector.broadcast %6 : vector<16x1xf32> to vector<16x32xf32>
    %8 = arith.subf %0, %7 : vector<16x32xf32>
    %9 = arith.mulf %8, %8 : vector<16x32xf32>
    %cst_6 = arith.constant dense<0.000000e+00> : vector<16xf32>
    %10 = vector.multi_reduction <add>, %9, %cst_6 [1] : vector<16x32xf32> to vector<16xf32>
    %11 = vector.shape_cast %10 : vector<16xf32> to vector<16x1xf32>
    %cst_7 = arith.constant 3.200000e+01 : f32
    %12 = vector.broadcast %cst_7 : f32 to vector<16x1xf32>
    %13 = arith.divf %11, %12 : vector<16x1xf32>
    %14 = vector.broadcast %6 : vector<16x1xf32> to vector<16x32xf32>
    %15 = arith.subf %0, %14 : vector<16x32xf32>
    %cst_8 = arith.constant 9.99999996E-13 : f32
    %16 = vector.broadcast %cst_8 : f32 to vector<16x1xf32>
    %17 = arith.addf %13, %16 : vector<16x1xf32>
    %18 = math.rsqrt %17 : vector<16x1xf32>
    %19 = vector.broadcast %18 : vector<16x1xf32> to vector<16x32xf32>
    %20 = arith.mulf %15, %19 : vector<16x32xf32>
    %21 = vector.broadcast %1 : vector<1x32xf32> to vector<16x32xf32>
    %22 = arith.mulf %20, %21 : vector<16x32xf32>
    %23 = vector.broadcast %2 : vector<1x32xf32> to vector<16x32xf32>
    %24 = arith.addf %22, %23 : vector<16x32xf32>
    %25 = arith.truncf %24 : vector<16x32xf32> to vector<16x32xbf16>
    %c0_9 = arith.constant 0 : index
    %c0_10 = arith.constant 0 : index
    %26 = vector.load %arg4[%c0_9, %c0_10] : memref<16x32xbf16, #tpu.memory_space<vmem>>, vector<16x32xbf16>
    tpu.vector_store %arg4[%c0_9, %c0_10], %25 {strides = array<i32>} : memref<16x32xbf16, #tpu.memory_space<vmem>>, vector<16x32xbf16>,
    return
  }
  func.func @transform_0(%arg0: i32) -> (i32, i32) {
    %c0_i32 = arith.constant 0 : i32
    %c0_i32_0 = arith.constant 0 : i32
    return %arg0, %c0_i32 : i32, i32
  }
  func.func @transform_1(%arg0: i32) -> (i32, i32) {
    %c0_i32 = arith.constant 0 : i32
    %c0_i32_0 = arith.constant 0 : i32
    %c0_i32_1 = arith.constant 0 : i32
    return %c0_i32, %c0_i32_0 : i32, i32
  }
  func.func @transform_2(%arg0: i32) -> (i32, i32) {
    %c0_i32 = arith.constant 0 : i32
    %c0_i32_0 = arith.constant 0 : i32
    %c0_i32_1 = arith.constant 0 : i32
    return %c0_i32, %c0_i32_0 : i32, i32
  }
  func.func @transform_3(%arg0: i32) -> (i32, i32) {
    %c0_i32 = arith.constant 0 : i32
    %c0_i32_0 = arith.constant 0 : i32
    return %arg0, %c0_i32 : i32, i32
  }
}

</mosaic_0001>

<llo_original>
// kernel: tpu_custom_call.1
$region0: #{tpu_custom_call.1}
  #allocation0 [shape = 'u32[]', space=smem, size = 0x4, offset = 0x4, fixed_abs, tag = 'smem constant byte address 0x4 - core index']
  #allocation1 [shape = 'u32[144,128]{1,0:T(1,128)}', space=vmem, size = 0x12000, scoped, tag = 'internal scratch']
  %s0 = inlined_call_operand.hbm [shape: f32[16,32], index: 0, kind: input, shape index: {}]
  %s1 = inlined_call_operand.vmem [shape: f32[1,32], index: 1, kind: input, shape index: {}]
  %s2 = inlined_call_operand.vmem [shape: f32[1,32], index: 2, kind: input, shape index: {}]
  %s3 = inlined_call_operand.hbm [shape: bf16[16,32], index: 3, kind: output, shape index: {}]
  %s4 = sld [smem:[#allocation0]]
  $region26: #{tpu_custom_call.1} parent=0
    _
  %s6 = ssub.s32 1, %s4
  %s7 = scalar_select 0, %s6, %s4
  $region1: #{tpu_custom_call.1} parent=0
    #allocation2 [shape = 'u8[8192]{0}', space=vmem, size = 0x2000, scoped, tag = 'input window, operand 0, single buffered']
    #allocation3 [shape = 's32[1]{0}', space=sflag, size = 0x4, scoped, tag = 'scoped memory for tpu_custom_call.1']
    #allocation4 [shape = 's32[1]{0}', space=sflag, size = 0x4, scoped, tag = 'scoped memory for tpu_custom_call.1']
    #allocation5 [shape = 'u8[4096]{0}', space=vmem, size = 0x1000, scoped, tag = 'output window, operand 0, single buffered']
    %8 = vsyncpa [#allocation3], 0
    %9 = vsyncpa [#allocation4], 0
    // Predicated region
    $region2: #{tpu_custom_call.1} parent=1 // pred_check
      _
    $region3: #{tpu_custom_call.1} parent=1 // pred_check_branch
      %11 = sbr.rel (0) target = $region5
    $region4: #{tpu_custom_call.1} parent=1 // pred_region
      %s13 = ssub.s32 256, 256
      %14 = vsyncadd [#allocation3], %s13
      %s15 = sshll.u32 [#allocation2], 4
      %s16 = int_to_ptr.vmem [resolvable:$true] %s15
      %21 = dma.hbm_to_vmem [thread:$0]  %s0, 256, %s16, [#allocation3], 128, 128, 8
    $region5: #{tpu_custom_call.1} parent=1 // pred_fallthru
      _
    // Predicated region
    $region6: #{tpu_custom_call.1} parent=1 // pred_check
      _
    $region7: #{tpu_custom_call.1} parent=1 // pred_check_branch
      %23 = sbr.rel (0) target = $region9
    $region8: #{tpu_custom_call.1} parent=1 // pred_region
      _
    $region9: #{tpu_custom_call.1} parent=1 // pred_fallthru
      _
    // Predicated region
    $region10: #{tpu_custom_call.1} parent=1 // pred_check
      _
    $region11: #{tpu_custom_call.1} parent=1 // pred_check_branch
      %25 = sbr.rel (0) target = $region13
    $region12: #{tpu_custom_call.1} parent=1 // pred_region
      _
    $region13: #{tpu_custom_call.1} parent=1 // pred_fallthru
      _
    // Predicated region
    $region14: #{tpu_custom_call.1} parent=1 // pred_check
      _
    $region15: #{tpu_custom_call.1} parent=1 // pred_check_branch
      %27 = sbr.rel (0) target = $region17
    $region16: #{tpu_custom_call.1} parent=1 // pred_region
      %28 = dma.done [#allocation3], 256
    $region17: #{tpu_custom_call.1} parent=1 // pred_fallthru
      _
    %v29 = vld [vmem:[#allocation2] sm:$0xff]
    %v30 = vld [vmem:[#allocation2 + $0x8] sm:$0xff]
    %v31 = vld [vmem:[%s1] sm:$0x1]
    %v32 = vld [vmem:[%s2] sm:$0x1]
    %vm33 = vcmask 261120
    %v34 = vsel %vm33, %v29, 0.0
    %35 = vadd.xlane.f32.xlu0 %v34
    %v36 = vpop.xlane.xlu0 %35
    %v37 = vsel %vm33, %v30, 0.0
    %38 = vadd.xlane.f32.xlu0 %v37
    %v39 = vpop.xlane.xlu0 %38
    %v40 = vrcp.pop 32.0
    %v41 = vmul.f32 %v36, %v40
    %v42 = vmul.f32 %v39, %v40
    %v43 = vsub.f32 %v29, %v41
    %v44 = vsub.f32 %v30, %v42
    %v45 = vmul.f32 %v43, %v43
    %v46 = vmul.f32 %v44, %v44
    %v47 = vsel %vm33, %v45, 0.0
    %48 = vadd.xlane.f32.xlu0 %v47
    %v49 = vpop.xlane.xlu0 %48
    %v50 = vsel %vm33, %v46, 0.0
    %51 = vadd.xlane.f32.xlu0 %v50
    %v52 = vpop.xlane.xlu0 %51
    %v53 = vmul.f32 %v49, %v40
    %v54 = vmul.f32 %v52, %v40
    %v55 = vadd.f32 %v53, 1e-12
    %v56 = vadd.f32 %v54, 1e-12
    %v57 = vrsqrt.pop %v55
    %v58 = vrsqrt.pop %v56
    %v59 = vmul.f32 %v43, %v57
    %v60 = vmul.f32 %v44, %v58
    %v62 = vlaneseq
    %v63 = vshrl.u32 %v62, 7
    %v64 = vsub.s32 0, %v63
    %v65 = vrot.slane %v31, %v64
    %v67 = vmul.f32 %v59, %v65
    %v68 = vmul.f32 %v60, %v65
    %v70 = vlaneseq
    %v71 = vshrl.u32 %v70, 7
    %v72 = vsub.s32 0, %v71
    %v73 = vrot.slane %v32, %v72
    %v75 = vadd.f32 %v67, %v73
    %v76 = vadd.f32 %v68, %v73
    %v77 = vpack.c.bf16 %v76, %v75
    %v79 = vunpack.c.l.b16 %v77
    %v80 = vunpack.c.h.b16 %v77
    %v81 = vpack.c.b16 %v79, %v79
    %v82 = vpack.c.b16 %v80, %v80
    %vm85 = vcmask 257024
    %86 = vst.msk [vmem:[#allocation5] sm:$0xf] %vm85, %v81
    %87 = vst.msk [vmem:[#allocation5 + $0x4] sm:$0xf] %vm85, %v82
    // Predicated region
    $region18: #{tpu_custom_call.1} parent=1 // pred_check
      _
    $region19: #{tpu_custom_call.1} parent=1 // pred_check_branch
      %89 = sbr.rel (0) target = $region21
    $region20: #{tpu_custom_call.1} parent=1 // pred_region
      %s91 = ssub.s32 128, 128
      %92 = vsyncadd [#allocation4], %s91
      %s93 = sshll.u32 [#allocation5], 4
      %s94 = int_to_ptr.vmem [resolvable:$true] %s93
      %99 = dma.vmem_to_hbm [thread:$0]  %s94, 128, %s3, [#allocation4], 64, 64, 4
    $region21: #{tpu_custom_call.1} parent=1 // pred_fallthru
      _
    // Predicated region
    $region22: #{tpu_custom_call.1} parent=1 // pred_check
      _
    $region23: #{tpu_custom_call.1} parent=1 // pred_check_branch
      %101 = sbr.rel (0) target = $region25
    $region24: #{tpu_custom_call.1} parent=1 // pred_region
      %102 = dma.done [#allocation4], 128
    $region25: #{tpu_custom_call.1} parent=1 // pred_fallthru
      _
    %103 = vsyncpa [#allocation3], 1
    %104 = vsyncpa [#allocation4], 1

</llo_original>
